<compile_context>
chip_gen: v5e
topology: v5e:2x2
jax: 0.10.0
libtpu: 0.0.40
codegen_flags: <defaults>
</compile_context>

<pallas_src>
import jax
import jax.numpy as jnp
import numpy as np
from jax.experimental import pallas as pl
from jax.experimental.pallas import tpu as pltpu


# ---------------------------------------------------------------------------
# helpers
# ---------------------------------------------------------------------------
def _round_up(v, m):
    return ((v + m - 1) // m) * m


def _pad_rows(a, n_to):
    pad = n_to - a.shape[0]
    if pad <= 0:
        return a
    widths = ((0, pad),) + ((0, 0),) * (a.ndim - 1)
    return jnp.pad(a, widths)


def _fold_bn(gamma, beta, rm, rv, eps=1e-5):
    scale = gamma / jnp.sqrt(rv + eps)
    shift = beta - rm * scale
    return scale, shift


# ---------------------------------------------------------------------------
# Kernel 1: fused q/k/v projection   y = x @ [wq|wk|wv] + [bq|bk|bv]
# ---------------------------------------------------------------------------
def _qkv_kernel(x_ref, w_ref, b_ref, o_ref):
    o_ref[...] = (
        jnp.dot(x_ref[...], w_ref[...], preferred_element_type=jnp.float32)
        + b_ref[...]
    )


def fused_qkv_projection(x, w, b, *, tile=512):
    n, cin = x.shape
    cqkv = w.shape[1]
    tm = min(tile, _round_up(n, 8))
    n_pad = _round_up(n, tm)
    x_p = _pad_rows(x, n_pad)
    out = pl.pallas_call(
        _qkv_kernel,
        out_shape=jax.ShapeDtypeStruct((n_pad, cqkv), jnp.float32),
        grid=(n_pad // tm,),
        in_specs=[
            pl.BlockSpec((tm, cin), lambda i: (i, 0)),
            pl.BlockSpec((cin, cqkv), lambda i: (0, 0)),
            pl.BlockSpec((1, cqkv), lambda i: (0, 0)),
        ],
        out_specs=pl.BlockSpec((tm, cqkv), lambda i: (i, 0)),
        compiler_params=pltpu.CompilerParams(dimension_semantics=("parallel",)),
    )(x_p, w, b.reshape(1, cqkv))
    return out[:n]


# ---------------------------------------------------------------------------
# Kernel 2: point-transformer attention on lane-dense flattened slabs.
#
# Column conventions (ns = nsample, C = out_planes, cs = C // share_planes):
#   h     : (tn, ns*3)   column s*3 + k            (ReLU'd linear_p layer-1 output)
#   x_q   : (tn, C)      (BN1 scale s1 and -t1 folded in on the host)
#   x_k   : (tn, ns*C)   column s*C + c, bf16      (BN1 scale s1 folded in)
#   x_v   : (tn, ns*C)   column s*C + c, bf16      (no BN on v path)
#   a/sm  : (tn, ns*cs)  column s*cs + cg
# Structured host-built matrices turn every per-neighbour linear / expand / reduce into an
# MXU matmul (block-diagonal wp2, ww1, ww2; 0/1 group-sum S, expansion E, reduction R).
# ---------------------------------------------------------------------------
def _pt_attn_kernel(h_ref, xq_ref, xk_ref, xv_ref,
                    wh_ref, wq_ref, ww1_ref, ww2_ref,
                    smat_ref, emat_ref, rmat_ref,
                    bpr_ref, bw_ref, out_ref):
    f32 = jnp.float32
    half = wq_ref.shape[1]                      # ns*C (512)

    # p_r (unscaled) and (p_r*s1 - x_q') in one fused MXU pass over a (ns*3, 2*ns*C) weight.
    pr_full = (jnp.dot(h_ref[...], wh_ref[...], preferred_element_type=f32)
               + bpr_ref[...])                                        # (tn, 2*ns*C)
    p_r = pr_full[:, :half]                                           # unscaled, for aggregation
    aug = pr_full[:, half:] + jnp.dot(xq_ref[...], wq_ref[...],
                                      preferred_element_type=f32)     # p_r*s1 - x_q' (+ biases)

    # w = relu((x_k - x_q + p_r) * s1 + t1)    (s1, t1 folded on host)
    w = jnp.maximum(xk_ref[...].astype(f32) + aug, 0.0)               # (tn, ns*C) lane-dense

    # linear_w: per-neighbour Linear(C -> cs), ReLU, Linear(cs -> cs) as block-diag matmuls
    a = jnp.dot(w, ww1_ref[...], preferred_element_type=f32) + bw_ref[0:1, :]
    a = jnp.maximum(a, 0.0)
    a = jnp.dot(a, ww2_ref[...], preferred_element_type=f32) + bw_ref[1:2, :]   # (tn, ns*cs)

    # softmax over the neighbour axis; column j belongs to share-channel group (j % cs).
    a = a - jnp.max(a, axis=-1, keepdims=True)     # row max is uniform within every group
    ex = jnp.exp(a)                                # lane-dense EUP
    denom = jnp.dot(ex, smat_ref[...], preferred_element_type=f32)    # per-group sums (MXU)
    sm = ex * pl.reciprocal(denom, approx=True)

    # aggregation: out[:, c] = sum_s (x_v + p_r)[:, s*C + c] * sm[:, s*cs + (c % cs)]
    wt = jnp.dot(sm, emat_ref[...], preferred_element_type=f32)       # expand to (tn, ns*C)
    prod = (xv_ref[...].astype(f32) + p_r) * wt
    out_ref[...] = jnp.dot(prod, rmat_ref[...], preferred_element_type=f32)


# ---------------------------------------------------------------------------
# Glue (pointops.queryandgroup equivalent): KNN indices + gathers in plain JAX
# ---------------------------------------------------------------------------
def knn_query(nsample, p, o):
    # TODO(synk): pointops' KNN is a CUDA kernel; indices built here in plain JAX with an O(N^2)
    #             distance matrix -- replace with a tiled/space-partitioned search for large N.
    # TODO(synk): if a batch segment has < nsample points, top_k returns cross-batch neighbours
    #             (inf distance) unlike pointops' padding behaviour.
    n = p.shape[0]
    o = jnp.asarray(o, jnp.int32)
    batch_id = jnp.sum(jnp.arange(n)[:, None] >= o[None, :], axis=1)
    d2 = jnp.sum((p[:, None, :] - p[None, :, :]) ** 2, axis=-1)
    d2 = jnp.where(batch_id[:, None] != batch_id[None, :], jnp.inf, d2)
    _, idx = jax.lax.top_k(-d2, nsample)
    return idx


# ---------------------------------------------------------------------------
# Full layer
# ---------------------------------------------------------------------------
def point_transformer_layer(p, x, o, params, *, nsample=16, share_planes=8,
                            tn=256, proj_tile=512):
    n = x.shape[0]
    mid = params["wq"].shape[1]
    cout = params["wv"].shape[1]
    # The module defines mid_planes = out_planes // 1, so they are always equal; the host-side
    # weight folding below relies on it.
    assert mid == cout, "PointTransformerLayer requires mid_planes == out_planes"
    cs = mid // share_planes
    ns = nsample
    f32 = jnp.float32
    bf16 = jnp.bfloat16

    # ---- fold the three eval-mode BatchNorms into the neighbouring linears (host) ----
    sp, tp = _fold_bn(params["bn_p_g"], params["bn_p_b"], params["bn_p_rm"], params["bn_p_rv"])
    s1, t1 = _fold_bn(params["bn_w1_g"], params["bn_w1_b"], params["bn_w1_rm"], params["bn_w1_rv"])
    s2, t2 = _fold_bn(params["bn_w2_g"], params["bn_w2_b"], params["bn_w2_rm"], params["bn_w2_rv"])

    wp1_f = params["wp1"] * sp[None, :]
    bp1_f = params["bp1"] * sp + tp
    wq_f = params["wq"] * s1[None, :]
    bq_f = params["bq"] * s1 - t1       # so (x_k - x_q + p_r)*s1 + t1 comes out of the subtraction
    wk_f = params["wk"] * s1[None, :]
    bk_f = params["bk"] * s1
    ww1_f = params["ww1"] * s2[None, :]
    bw1_f = params["bw1"] * s2 + t2

    # ---- fused q/k/v projection: one Pallas matmul, x read from HBM once ----
    wqkv = jnp.concatenate([wq_f, wk_f, params["wv"]], axis=1)
    bqkv = jnp.concatenate([bq_f, bk_f, params["bv"]], axis=0)
    qkv = fused_qkv_projection(x, wqkv, bqkv, tile=proj_tile)
    x_q = qkv[:, :mid]
    x_k = qkv[:, mid:2 * mid].astype(bf16)     # big gathered streams in bf16 (halves HBM bytes)
    x_v = qkv[:, 2 * mid:].astype(bf16)

    # ---- pointops.queryandgroup equivalent (plain-JAX glue) ----
    # TODO(synk): move these gathers into the attention kernel (scalar-prefetched idx + DMA row
    #             gather from HBM) to remove the write + re-read round trip of the grouped slabs.
    idx = knn_query(nsample, p, o)
    p_rel = p[idx] - p[:, None, :]                                      # (N, ns, 3)
    # linear_p layer 1 (+BN folded, ReLU) on the wrapper: same byte footprint as p_rel.
    h = jnp.maximum(jnp.einsum("nsk,kj->nsj", p_rel, wp1_f) + bp1_f, 0.0)
    h_flat = h.reshape(n, ns * 3).astype(f32)                           # (N, 48)
    xk_flat = x_k[idx].reshape(n, ns * mid)                             # (N, 512) bf16
    xv_flat = x_v[idx].reshape(n, ns * cout)                            # (N, 512) bf16

    # ---- host-built structured weights (block-diagonal / 0-1 expansion / reduction) ----
    eye_ns = jnp.eye(ns, dtype=f32)
    wp2 = params["wp2"].astype(f32)
    wh = jnp.concatenate(
        [jnp.kron(eye_ns, wp2),                                         # -> p_r (unscaled)
         jnp.kron(eye_ns, wp2 * s1[None, :])], axis=1)                  # -> p_r * s1
    wq_neg = -jnp.tile(jnp.eye(cout, dtype=f32), (1, ns))               # tiles -x_q' across ns
    ww1_bd = jnp.kron(eye_ns, ww1_f.astype(f32))                        # (ns*C, ns*cs)
    ww2_bd = jnp.kron(eye_ns, params["ww2"].astype(f32))                # (ns*cs, ns*cs)
    smat = jnp.tile(jnp.eye(cs, dtype=f32), (ns, ns))                   # group-sum over neighbours
    emat = jnp.kron(eye_ns, jnp.tile(jnp.eye(cs, dtype=f32), (1, cout // cs)))  # (ns*cs, ns*C)
    rmat = jnp.tile(jnp.eye(cout, dtype=f32), (ns, 1))                  # (ns*C, C) neighbour reduce
    bpr = jnp.concatenate([jnp.tile(params["bp2"].astype(f32), ns),
                           jnp.tile((params["bp2"] * s1).astype(f32), ns)])[None, :]  # (1, 2*ns*C)
    bw = jnp.stack([jnp.tile(bw1_f.astype(f32), ns),
                    jnp.tile(params["bw2"].astype(f32), ns)])           # (2, ns*cs)

    # ---- pad the point axis; cap the tile so the grid has >= 2 programs (v7x: 2 TCs) ----
    tn_eff = min(tn, _round_up(max(1, -(-n // 2)), 32))
    n_pad = _round_up(n, tn_eff)
    h_flat = _pad_rows(h_flat, n_pad)
    x_q_p = _pad_rows(x_q, n_pad)
    xk_flat = _pad_rows(xk_flat, n_pad)
    xv_flat = _pad_rows(xv_flat, n_pad)

    chalf = ns * cout                                                   # 512
    macs_pt = (ns * 3 * 2 * chalf + cout * chalf + chalf * ns * cs
               + 2 * (ns * cs) ** 2 + ns * cs * chalf + chalf * cout)
    cost = pl.CostEstimate(
        flops=int(n_pad * 2 * macs_pt),
        transcendentals=int(n_pad * 2 * ns * cs),
        bytes_accessed=int(n_pad * (4 * (ns * 3 + 2 * cout) + 2 * 2 * chalf) + 1_000_000),
    )

    # VMEM footprint @ tn=256: tiled ins ~1.5 MiB (2x buffered) + structured weights ~1.8 MiB
    # + live f32 intermediates ~3 MiB  =>  well under v7x's 64 MiB; 24 MiB limit leaves headroom.
    out = pl.pallas_call(
        _pt_attn_kernel,
        out_shape=jax.ShapeDtypeStruct((n_pad, cout), jnp.float32),
        grid=(n_pad // tn_eff,),
        in_specs=[
            pl.BlockSpec((tn_eff, ns * 3), lambda i: (i, 0)),
            pl.BlockSpec((tn_eff, cout), lambda i: (i, 0)),
            pl.BlockSpec((tn_eff, chalf), lambda i: (i, 0)),
            pl.BlockSpec((tn_eff, chalf), lambda i: (i, 0)),
            pl.BlockSpec((ns * 3, 2 * chalf), lambda i: (0, 0)),
            pl.BlockSpec((cout, chalf), lambda i: (0, 0)),
            pl.BlockSpec((chalf, ns * cs), lambda i: (0, 0)),
            pl.BlockSpec((ns * cs, ns * cs), lambda i: (0, 0)),
            pl.BlockSpec((ns * cs, ns * cs), lambda i: (0, 0)),
            pl.BlockSpec((ns * cs, chalf), lambda i: (0, 0)),
            pl.BlockSpec((chalf, cout), lambda i: (0, 0)),
            pl.BlockSpec((1, 2 * chalf), lambda i: (0, 0)),
            pl.BlockSpec((2, ns * cs), lambda i: (0, 0)),
        ],
        out_specs=pl.BlockSpec((tn_eff, cout), lambda i: (i, 0)),
        compiler_params=pltpu.CompilerParams(
            dimension_semantics=("parallel",),
            vmem_limit_bytes=24 * 1024 * 1024,
        ),
        cost_estimate=cost,
    )(h_flat, x_q_p, xk_flat, xv_flat,
      wh, wq_neg, ww1_bd, ww2_bd, smat, emat, rmat, bpr, bw)

    return out[:n]


# ---------------------------------------------------------------------------
# Pure-JAX reference (mirrors the PyTorch forward with eval-mode BN)
# ---------------------------------------------------------------------------
def reference(p, x, o, params, *, nsample=16, share_planes=8):
    x_q = x @ params["wq"] + params["bq"]
    x_k = x @ params["wk"] + params["bk"]
    x_v = x @ params["wv"] + params["bv"]

    idx = knn_query(nsample, p, o)
    p_rel = p[idx] - p[:, None, :]
    xk_g = x_k[idx]
    xv_g = x_v[idx]

    sp, tp = _fold_bn(params["bn_p_g"], params["bn_p_b"], params["bn_p_rm"], params["bn_p_rv"])
    s1, t1 = _fold_bn(params["bn_w1_g"], params["bn_w1_b"], params["bn_w1_rm"], params["bn_w1_rv"])
    s2, t2 = _fold_bn(params["bn_w2_g"], params["bn_w2_b"], params["bn_w2_rm"], params["bn_w2_rv"])

    pr = p_rel @ params["wp1"] + params["bp1"]
    pr = jnp.maximum(pr * sp + tp, 0.0)
    pr = pr @ params["wp2"] + params["bp2"]

    w = xk_g - x_q[:, None, :] + pr
    w = jnp.maximum(w * s1 + t1, 0.0)
    w = w @ params["ww1"] + params["bw1"]
    w = jnp.maximum(w * s2 + t2, 0.0)
    w = w @ params["ww2"] + params["bw2"]
    w = jax.nn.softmax(w, axis=1)

    n, ns, c = xv_g.shape
    s = share_planes
    v = (xv_g + pr).reshape(n, ns, s, c // s)
    return (v * w[:, :, None, :]).sum(1).reshape(n, c)


# ---------------------------------------------------------------------------
if __name__ == "__main__":
    in_planes, out_planes, share_planes, nsample = 32, 32, 8, 16
    mid = out_planes
    cs = out_planes // share_planes
    n = 384   # deliberately NOT a multiple of the point tile to exercise the padded grid

    key = jax.random.PRNGKey(0)
    ks = jax.random.split(key, 32)
    f32 = jnp.float32

    def rnd(k, shape, scale=0.1):
        return (scale * jax.random.normal(k, shape)).astype(f32)

    params = {
        "wq": rnd(ks[0], (in_planes, mid)), "bq": rnd(ks[1], (mid,)),
        "wk": rnd(ks[2], (in_planes, mid)), "bk": rnd(ks[3], (mid,)),
        "wv": rnd(ks[4], (in_planes, out_planes)), "bv": rnd(ks[5], (out_planes,)),
        "wp1": rnd(ks[6], (3, 3), 0.5), "bp1": rnd(ks[7], (3,)),
        "bn_p_g": (1.0 + rnd(ks[8], (3,))).astype(f32), "bn_p_b": rnd(ks[9], (3,)),
        "bn_p_rm": rnd(ks[22], (3,)),
        "bn_p_rv": (1.0 + 0.1 * jnp.abs(jax.random.normal(ks[23], (3,)))).astype(f32),
        "wp2": rnd(ks[10], (3, out_planes), 0.5), "bp2": rnd(ks[11], (out_planes,)),
        "bn_w1_g": (1.0 + rnd(ks[12], (mid,))).astype(f32), "bn_w1_b": rnd(ks[13], (mid,)),
        "bn_w1_rm": rnd(ks[24], (mid,)),
        "bn_w1_rv": (1.0 + 0.1 * jnp.abs(jax.random.normal(ks[25], (mid,)))).astype(f32),
        "ww1": rnd(ks[14], (mid, cs), 0.2), "bw1": rnd(ks[15], (cs,)),
        "bn_w2_g": (1.0 + rnd(ks[16], (cs,))).astype(f32), "bn_w2_b": rnd(ks[17], (cs,)),
        "bn_w2_rm": rnd(ks[26], (cs,)),
        "bn_w2_rv": (1.0 + 0.1 * jnp.abs(jax.random.normal(ks[27], (cs,)))).astype(f32),
        "ww2": rnd(ks[18], (cs, cs), 0.5), "bw2": rnd(ks[19], (cs,)),
    }

    p = jax.random.uniform(ks[20], (n, 3), f32)
    x = jax.random.normal(ks[21], (n, in_planes), f32)
    o = jnp.array([n // 2, n], jnp.int32)   # two batch segments of 192 points each

    out = point_transformer_layer(p, x, o, params, nsample=nsample,
                                  share_planes=share_planes, tn=256)
    out = jax.block_until_ready(out)

    ref = reference(p, x, o, params, nsample=nsample, share_planes=share_planes)
    np.testing.assert_allclose(np.asarray(out), np.asarray(ref), rtol=2e-2, atol=2e-2)
    print("KERNEL_OK")
</pallas_src>

<mosaic_0001>
module attributes {stable_mosaic.version = 11 : i64} {
  func.func @_qkv_kernel(%arg0: i32, %arg1: memref<384x32xf32, #tpu.memory_space<vmem>>, %arg2: memref<32x96xf32, #tpu.memory_space<vmem>>, %arg3: memref<1x96xf32, #tpu.memory_space<vmem>>, %arg4: memref<384x96xf32, #tpu.memory_space<vmem>>) attributes {dimension_semantics = [#tpu.dimension_semantics<parallel>], iteration_bounds = array<i64: 1>, scalar_prefetch = 0 : i64, scratch_operands = 0 : i64, tpu.core_type = #tpu.core_type<tc>, window_params = [{transform_indices = @transform_0, window_bounds = array<i64: 384, 32>}, {pipeline_mode = #tpu.pipeline_mode<synchronous>, transform_indices = @transform_1, window_bounds = array<i64: 32, 96>}, {pipeline_mode = #tpu.pipeline_mode<synchronous>, transform_indices = @transform_2, window_bounds = array<i64: 1, 96>}, {transform_indices = @transform_3, window_bounds = array<i64: 384, 96>}]} {
    %c0 = arith.constant 0 : index
    %c0_0 = arith.constant 0 : index
    %0 = vector.load %arg1[%c0, %c0_0] : memref<384x32xf32, #tpu.memory_space<vmem>>, vector<384x32xf32>
    %c0_1 = arith.constant 0 : index
    %c0_2 = arith.constant 0 : index
    %1 = vector.load %arg2[%c0_1, %c0_2] : memref<32x96xf32, #tpu.memory_space<vmem>>, vector<32x96xf32>
    %cst = arith.constant dense<0.000000e+00> : vector<384x96xf32>
    %2 = tpu.matmul %0, %1, %cst {dimension_numbers = #tpu.dot_dimension_numbers<[1], [0], [0], [1], [0, 0, 1, 1], [], []>} : vector<384x32xf32>, vector<32x96xf32>, vector<384x96xf32> -> vector<384x96xf32>
    %c0_3 = arith.constant 0 : index
    %c0_4 = arith.constant 0 : index
    %3 = vector.load %arg3[%c0_3, %c0_4] : memref<1x96xf32, #tpu.memory_space<vmem>>, vector<1x96xf32>
    %4 = vector.broadcast %3 : vector<1x96xf32> to vector<384x96xf32>
    %5 = arith.addf %2, %4 : vector<384x96xf32>
    %c0_5 = arith.constant 0 : index
    %c0_6 = arith.constant 0 : index
    %6 = vector.load %arg4[%c0_5, %c0_6] : memref<384x96xf32, #tpu.memory_space<vmem>>, vector<384x96xf32>
    tpu.vector_store %arg4[%c0_5, %c0_6], %5 {strides = array<i32>} : memref<384x96xf32, #tpu.memory_space<vmem>>, vector<384x96xf32>,
    return
  }
  func.func @transform_0(%arg0: i32) -> (i32, i32) {
    %c0_i32 = arith.constant 0 : i32
    %c0_i32_0 = arith.constant 0 : i32
    return %arg0, %c0_i32 : i32, i32
  }
  func.func @transform_1(%arg0: i32) -> (i32, i32) {
    %c0_i32 = arith.constant 0 : i32
    %c0_i32_0 = arith.constant 0 : i32
    %c0_i32_1 = arith.constant 0 : i32
    return %c0_i32, %c0_i32_0 : i32, i32
  }
  func.func @transform_2(%arg0: i32) -> (i32, i32) {
    %c0_i32 = arith.constant 0 : i32
    %c0_i32_0 = arith.constant 0 : i32
    %c0_i32_1 = arith.constant 0 : i32
    return %c0_i32, %c0_i32_0 : i32, i32
  }
  func.func @transform_3(%arg0: i32) -> (i32, i32) {
    %c0_i32 = arith.constant 0 : i32
    %c0_i32_0 = arith.constant 0 : i32
    return %arg0, %c0_i32 : i32, i32
  }
}

</mosaic_0001>

<llo_original>
// kernel: tpu_custom_call.1
$region0: #{tpu_custom_call.1}
  #allocation0 [shape = 'u32[]', space=smem, size = 0x4, offset = 0x4, fixed_abs, tag = 'smem constant byte address 0x4 - core index']
  #allocation1 [shape = 'u32[72,128]{1,0:T(1,128)}', space=vmem, size = 0x9000, scoped, tag = 'internal scratch']
  %s0 = inlined_call_operand.vmem [shape: f32[384,32], index: 0, kind: input, shape index: {}]
  %s1 = inlined_call_operand.vmem [shape: f32[32,96], index: 1, kind: input, shape index: {}]
  %s2 = inlined_call_operand.vmem [shape: f32[1,96], index: 2, kind: input, shape index: {}]
  %s3 = inlined_call_operand.vmem [shape: f32[384,96], index: 3, kind: output, shape index: {}]
  %s4 = sld [smem:[#allocation0]]
  $region22: #{tpu_custom_call.1} parent=0
    _
  %s6 = ssub.s32 1, %s4
  %s7 = scalar_select 0, %s6, %s4
  // Predicated region
  $region2: #{tpu_custom_call.1} parent=0 // pred_check
    _
  $region3: #{tpu_custom_call.1} parent=0 // pred_check_branch
    %9 = sbr.rel (0) target = $region5
  $region4: #{tpu_custom_call.1} parent=0 // pred_region
    _
  $region5: #{tpu_custom_call.1} parent=0 // pred_fallthru
    _
  // Predicated region
  $region6: #{tpu_custom_call.1} parent=0 // pred_check
    _
  $region7: #{tpu_custom_call.1} parent=0 // pred_check_branch
    %11 = sbr.rel (0) target = $region9
  $region8: #{tpu_custom_call.1} parent=0 // pred_region
    _
  $region9: #{tpu_custom_call.1} parent=0 // pred_fallthru
    _
  // Predicated region
  $region10: #{tpu_custom_call.1} parent=0 // pred_check
    _
  $region11: #{tpu_custom_call.1} parent=0 // pred_check_branch
    %13 = sbr.rel (0) target = $region13
  $region12: #{tpu_custom_call.1} parent=0 // pred_region
    _
  $region13: #{tpu_custom_call.1} parent=0 // pred_fallthru
    _
  %v14 = vld [vmem:[%s0] sm:$0xff]
  %v15 = vld [vmem:[%s0 + $0x8] sm:$0xff]
  %v16 = vld [vmem:[%s0 + $0x10] sm:$0xff]
  %v17 = vld [vmem:[%s0 + $0x18] sm:$0xff]
  %v18 = vld [vmem:[%s0 + $0x20] sm:$0xff]
  %v19 = vld [vmem:[%s0 + $0x28] sm:$0xff]
  %v20 = vld [vmem:[%s0 + $0x30] sm:$0xff]
  %v21 = vld [vmem:[%s0 + $0x38] sm:$0xff]
  %v22 = vld [vmem:[%s0 + $0x40] sm:$0xff]
  %v23 = vld [vmem:[%s0 + $0x48] sm:$0xff]
  %v24 = vld [vmem:[%s0 + $0x50] sm:$0xff]
  %v25 = vld [vmem:[%s0 + $0x58] sm:$0xff]
  %v26 = vld [vmem:[%s0 + $0x60] sm:$0xff]
  %v27 = vld [vmem:[%s0 + $0x68] sm:$0xff]
  %v28 = vld [vmem:[%s0 + $0x70] sm:$0xff]
  %v29 = vld [vmem:[%s0 + $0x78] sm:$0xff]
  %v30 = vld [vmem:[%s0 + $0x80] sm:$0xff]
  %v31 = vld [vmem:[%s0 + $0x88] sm:$0xff]
  %v32 = vld [vmem:[%s0 + $0x90] sm:$0xff]
  %v33 = vld [vmem:[%s0 + $0x98] sm:$0xff]
  %v34 = vld [vmem:[%s0 + $0xa0] sm:$0xff]
  %v35 = vld [vmem:[%s0 + $0xa8] sm:$0xff]
  %v36 = vld [vmem:[%s0 + $0xb0] sm:$0xff]
  %v37 = vld [vmem:[%s0 + $0xb8] sm:$0xff]
  %v38 = vld [vmem:[%s0 + $0xc0] sm:$0xff]
  %v39 = vld [vmem:[%s0 + $0xc8] sm:$0xff]
  %v40 = vld [vmem:[%s0 + $0xd0] sm:$0xff]
  %v41 = vld [vmem:[%s0 + $0xd8] sm:$0xff]
  %v42 = vld [vmem:[%s0 + $0xe0] sm:$0xff]
  %v43 = vld [vmem:[%s0 + $0xe8] sm:$0xff]
  %v44 = vld [vmem:[%s0 + $0xf0] sm:$0xff]
  %v45 = vld [vmem:[%s0 + $0xf8] sm:$0xff]
  %v46 = vld [vmem:[%s0 + $0x100] sm:$0xff]
  %v47 = vld [vmem:[%s0 + $0x108] sm:$0xff]
  %v48 = vld [vmem:[%s0 + $0x110] sm:$0xff]
  %v49 = vld [vmem:[%s0 + $0x118] sm:$0xff]
  %v50 = vld [vmem:[%s0 + $0x120] sm:$0xff]
  %v51 = vld [vmem:[%s0 + $0x128] sm:$0xff]
  %v52 = vld [vmem:[%s0 + $0x130] sm:$0xff]
  %v53 = vld [vmem:[%s0 + $0x138] sm:$0xff]
  %v54 = vld [vmem:[%s0 + $0x140] sm:$0xff]
  %v55 = vld [vmem:[%s0 + $0x148] sm:$0xff]
  %v56 = vld [vmem:[%s0 + $0x150] sm:$0xff]
  %v57 = vld [vmem:[%s0 + $0x158] sm:$0xff]
  %v58 = vld [vmem:[%s0 + $0x160] sm:$0xff]
  %v59 = vld [vmem:[%s0 + $0x168] sm:$0xff]
  %v60 = vld [vmem:[%s0 + $0x170] sm:$0xff]
  %v61 = vld [vmem:[%s0 + $0x178] sm:$0xff]
  %v62 = vld [vmem:[%s1] sm:$0xff]
  %v63 = vld [vmem:[%s1 + $0x8] sm:$0xff]
  %v64 = vld [vmem:[%s1 + $0x10] sm:$0xff]
  %v65 = vld [vmem:[%s1 + $0x18] sm:$0xff]
  %v66 = vld [vmem:[%s2] sm:$0x1]
  %v68 = vperm.slane %v66, 0
  %vm70 = vcmask 261120
  %v72 = vsel %vm70, %v14, 0
  %v75 = vsel %vm70, %v15, 0
  %v78 = vsel %vm70, %v16, 0
  %v81 = vsel %vm70, %v17, 0
  %v84 = vsel %vm70, %v18, 0
  %v87 = vsel %vm70, %v19, 0
  %v90 = vsel %vm70, %v20, 0
  %v93 = vsel %vm70, %v21, 0
  %v96 = vsel %vm70, %v22, 0
  %v99 = vsel %vm70, %v23, 0
  %v102 = vsel %vm70, %v24, 0
  %v105 = vsel %vm70, %v25, 0
  %v108 = vsel %vm70, %v26, 0
  %v111 = vsel %vm70, %v27, 0
  %v114 = vsel %vm70, %v28, 0
  %v117 = vsel %vm70, %v29, 0
  %v120 = vsel %vm70, %v30, 0
  %v123 = vsel %vm70, %v31, 0
  %v126 = vsel %vm70, %v32, 0
  %v129 = vsel %vm70, %v33, 0
  %v132 = vsel %vm70, %v34, 0
  %v135 = vsel %vm70, %v35, 0
  %v138 = vsel %vm70, %v36, 0
  %v141 = vsel %vm70, %v37, 0
  %v144 = vsel %vm70, %v38, 0
  %v147 = vsel %vm70, %v39, 0
  %v150 = vsel %vm70, %v40, 0
  %v153 = vsel %vm70, %v41, 0
  %v156 = vsel %vm70, %v42, 0
  %v159 = vsel %vm70, %v43, 0
  %v162 = vsel %vm70, %v44, 0
  %v165 = vsel %vm70, %v45, 0
  %v168 = vsel %vm70, %v46, 0
  %v171 = vsel %vm70, %v47, 0
  %v174 = vsel %vm70, %v48, 0
  %v177 = vsel %vm70, %v49, 0
  %v180 = vsel %vm70, %v50, 0
  %v183 = vsel %vm70, %v51, 0
  %v186 = vsel %vm70, %v52, 0
  %v189 = vsel %vm70, %v53, 0
  %v192 = vsel %vm70, %v54, 0
  %v195 = vsel %vm70, %v55, 0
  %v198 = vsel %vm70, %v56, 0
  %v201 = vsel %vm70, %v57, 0
  %v204 = vsel %vm70, %v58, 0
  %v207 = vsel %vm70, %v59, 0
  %v210 = vsel %vm70, %v60, 0
  %v213 = vsel %vm70, %v61, 0
  %215 = vmatpush.msra.mxu0 0.0
  %216 = vmatpush.msra.mxu0 0.0
  %217 = vmatpush.msra.mxu0 0.0
  %218 = vmatpush.msra.mxu0 0.0
  %219 = vmatpush.msra.mxu0 0.0
  %220 = vmatpush.msra.mxu0 0.0
  %221 = vmatpush.msra.mxu0 0.0
  %222 = vmatpush.msra.mxu0 0.0
  %223 = vmatpush.msra.mxu0 0.0
  %224 = vmatpush.msra.mxu0 0.0
  %225 = vmatpush.msra.mxu0 0.0
  %226 = vmatpush.msra.mxu0 0.0
  %227 = vmatpush.msra.mxu0 %v65
  %228 = vmatpush.msra.mxu0 %v64
  %229 = vmatpush.msra.mxu0 %v63
  %230 = vmatpush.msra.mxu0 %v62
  %231 = vmatmul.f32.gmra.mxu0 %v72
  %v232 = vpop.f32.mrf.mxu0
  %v233 = vadd.f32 %v68, %v232
  %234 = vmatmul.f32.gmra.mxu0 %v75
  %v235 = vpop.f32.mrf.mxu0
  %v236 = vadd.f32 %v68, %v235
  %237 = vmatmul.f32.gmra.mxu0 %v78
  %v238 = vpop.f32.mrf.mxu0
  %v239 = vadd.f32 %v68, %v238
  %240 = vmatmul.f32.gmra.mxu0 %v81
  %v241 = vpop.f32.mrf.mxu0
  %v242 = vadd.f32 %v68, %v241
  %243 = vmatmul.f32.gmra.mxu0 %v84
  %v244 = vpop.f32.mrf.mxu0
  %v245 = vadd.f32 %v68, %v244
  %246 = vmatmul.f32.gmra.mxu0 %v87
  %v247 = vpop.f32.mrf.mxu0
  %v248 = vadd.f32 %v68, %v247
  %249 = vmatmul.f32.gmra.mxu0 %v90
  %v250 = vpop.f32.mrf.mxu0
  %v251 = vadd.f32 %v68, %v250
  %252 = vmatmul.f32.gmra.mxu0 %v93
  %v253 = vpop.f32.mrf.mxu0
  %v254 = vadd.f32 %v68, %v253
  %255 = vmatmul.f32.gmra.mxu0 %v96
  %v256 = vpop.f32.mrf.mxu0
  %v257 = vadd.f32 %v68, %v256
  %258 = vmatmul.f32.gmra.mxu0 %v99
  %v259 = vpop.f32.mrf.mxu0
  %v260 = vadd.f32 %v68, %v259
  %261 = vmatmul.f32.gmra.mxu0 %v102
  %v262 = vpop.f32.mrf.mxu0
  %v263 = vadd.f32 %v68, %v262
  %264 = vmatmul.f32.gmra.mxu0 %v105
  %v265 = vpop.f32.mrf.mxu0
  %v266 = vadd.f32 %v68, %v265
  %267 = vmatmul.f32.gmra.mxu0 %v108
  %v268 = vpop.f32.mrf.mxu0
  %v269 = vadd.f32 %v68, %v268
  %270 = vmatmul.f32.gmra.mxu0 %v111
  %v271 = vpop.f32.mrf.mxu0
  %v272 = vadd.f32 %v68, %v271
  %273 = vmatmul.f32.gmra.mxu0 %v114
  %v274 = vpop.f32.mrf.mxu0
  %v275 = vadd.f32 %v68, %v274
  %276 = vmatmul.f32.gmra.mxu0 %v117
  %v277 = vpop.f32.mrf.mxu0
  %v278 = vadd.f32 %v68, %v277
  %279 = vmatmul.f32.gmra.mxu0 %v120
  %v280 = vpop.f32.mrf.mxu0
  %v281 = vadd.f32 %v68, %v280
  %282 = vmatmul.f32.gmra.mxu0 %v123
  %v283 = vpop.f32.mrf.mxu0
  %v284 = vadd.f32 %v68, %v283
  %285 = vmatmul.f32.gmra.mxu0 %v126
  %v286 = vpop.f32.mrf.mxu0
  %v287 = vadd.f32 %v68, %v286
  %288 = vmatmul.f32.gmra.mxu0 %v129
  %v289 = vpop.f32.mrf.mxu0
  %v290 = vadd.f32 %v68, %v289
  %291 = vmatmul.f32.gmra.mxu0 %v132
  %v292 = vpop.f32.mrf.mxu0
  %v293 = vadd.f32 %v68, %v292
  %294 = vmatmul.f32.gmra.mxu0 %v135
  %v295 = vpop.f32.mrf.mxu0
  %v296 = vadd.f32 %v68, %v295
  %297 = vmatmul.f32.gmra.mxu0 %v138
  %v298 = vpop.f32.mrf.mxu0
  %v299 = vadd.f32 %v68, %v298
  %300 = vmatmul.f32.gmra.mxu0 %v141
  %v301 = vpop.f32.mrf.mxu0
  %v302 = vadd.f32 %v68, %v301
  %303 = vmatmul.f32.gmra.mxu0 %v144
  %v304 = vpop.f32.mrf.mxu0
  %v305 = vadd.f32 %v68, %v304
  %306 = vmatmul.f32.gmra.mxu0 %v147
  %v307 = vpop.f32.mrf.mxu0
  %v308 = vadd.f32 %v68, %v307
  %309 = vmatmul.f32.gmra.mxu0 %v150
  %v310 = vpop.f32.mrf.mxu0
  %v311 = vadd.f32 %v68, %v310
  %312 = vmatmul.f32.gmra.mxu0 %v153
  %v313 = vpop.f32.mrf.mxu0
  %v314 = vadd.f32 %v68, %v313
  %315 = vmatmul.f32.gmra.mxu0 %v156
  %v316 = vpop.f32.mrf.mxu0
  %v317 = vadd.f32 %v68, %v316
  %318 = vmatmul.f32.gmra.mxu0 %v159
  %v319 = vpop.f32.mrf.mxu0
  %v320 = vadd.f32 %v68, %v319
  %321 = vmatmul.f32.gmra.mxu0 %v162
  %v322 = vpop.f32.mrf.mxu0
  %v323 = vadd.f32 %v68, %v322
  %324 = vmatmul.f32.gmra.mxu0 %v165
  %v325 = vpop.f32.mrf.mxu0
  %v326 = vadd.f32 %v68, %v325
  %327 = vmatmul.f32.gmra.mxu0 %v168
  %v328 = vpop.f32.mrf.mxu0
  %v329 = vadd.f32 %v68, %v328
  %330 = vmatmul.f32.gmra.mxu0 %v171
  %v331 = vpop.f32.mrf.mxu0
  %v332 = vadd.f32 %v68, %v331
  %333 = vmatmul.f32.gmra.mxu0 %v174
  %v334 = vpop.f32.mrf.mxu0
  %v335 = vadd.f32 %v68, %v334
  %336 = vmatmul.f32.gmra.mxu0 %v177
  %v337 = vpop.f32.mrf.mxu0
  %v338 = vadd.f32 %v68, %v337
  %339 = vmatmul.f32.gmra.mxu0 %v180
  %v340 = vpop.f32.mrf.mxu0
  %v341 = vadd.f32 %v68, %v340
  %342 = vmatmul.f32.gmra.mxu0 %v183
  %v343 = vpop.f32.mrf.mxu0
  %v344 = vadd.f32 %v68, %v343
  %345 = vmatmul.f32.gmra.mxu0 %v186
  %v346 = vpop.f32.mrf.mxu0
  %v347 = vadd.f32 %v68, %v346
  %348 = vmatmul.f32.gmra.mxu0 %v189
  %v349 = vpop.f32.mrf.mxu0
  %v350 = vadd.f32 %v68, %v349
  %351 = vmatmul.f32.gmra.mxu0 %v192
  %v352 = vpop.f32.mrf.mxu0
  %v353 = vadd.f32 %v68, %v352
  %354 = vmatmul.f32.gmra.mxu0 %v195
  %v355 = vpop.f32.mrf.mxu0
  %v356 = vadd.f32 %v68, %v355
  %357 = vmatmul.f32.gmra.mxu0 %v198
  %v358 = vpop.f32.mrf.mxu0
  %v359 = vadd.f32 %v68, %v358
  %360 = vmatmul.f32.gmra.mxu0 %v201
  %v361 = vpop.f32.mrf.mxu0
  %v362 = vadd.f32 %v68, %v361
  %363 = vmatmul.f32.gmra.mxu0 %v204
  %v364 = vpop.f32.mrf.mxu0
  %v365 = vadd.f32 %v68, %v364
  %366 = vmatmul.f32.gmra.mxu0 %v207
  %v367 = vpop.f32.mrf.mxu0
  %v368 = vadd.f32 %v68, %v367
  %369 = vmatmul.f32.gmra.mxu0 %v210
  %v370 = vpop.f32.mrf.mxu0
  %v371 = vadd.f32 %v68, %v370
  %372 = vmatmul.f32.gmra.mxu0 %v213
  %v373 = vpop.f32.mrf.mxu0
  %v374 = vadd.f32 %v68, %v373
  %375 = vdwg.mxu0
  %vm376 = vcmask 785408
  %377 = vst.msk [vmem:[%s3] sm:$0xff] %vm376, %v233
  %378 = vst.msk [vmem:[%s3 + $0x8] sm:$0xff] %vm376, %v236
  %379 = vst.msk [vmem:[%s3 + $0x10] sm:$0xff] %vm376, %v239
  %380 = vst.msk [vmem:[%s3 + $0x18] sm:$0xff] %vm376, %v242
  %381 = vst.msk [vmem:[%s3 + $0x20] sm:$0xff] %vm376, %v245
  %382 = vst.msk [vmem:[%s3 + $0x28] sm:$0xff] %vm376, %v248
  %383 = vst.msk [vmem:[%s3 + $0x30] sm:$0xff] %vm376, %v251
  %384 = vst.msk [vmem:[%s3 + $0x38] sm:$0xff] %vm376, %v254
  %385 = vst.msk [vmem:[%s3 + $0x40] sm:$0xff] %vm376, %v257
  %386 = vst.msk [vmem:[%s3 + $0x48] sm:$0xff] %vm376, %v260
  %387 = vst.msk [vmem:[%s3 + $0x50] sm:$0xff] %vm376, %v263
  %388 = vst.msk [vmem:[%s3 + $0x58] sm:$0xff] %vm376, %v266
  %389 = vst.msk [vmem:[%s3 + $0x60] sm:$0xff] %vm376, %v269
  %390 = vst.msk [vmem:[%s3 + $0x68] sm:$0xff] %vm376, %v272
  %391 = vst.msk [vmem:[%s3 + $0x70] sm:$0xff] %vm376, %v275
  %392 = vst.msk [vmem:[%s3 + $0x78] sm:$0xff] %vm376, %v278
  %393 = vst.msk [vmem:[%s3 + $0x80] sm:$0xff] %vm376, %v281
  %394 = vst.msk [vmem:[%s3 + $0x88] sm:$0xff] %vm376, %v284
  %395 = vst.msk [vmem:[%s3 + $0x90] sm:$0xff] %vm376, %v287
  %396 = vst.msk [vmem:[%s3 + $0x98] sm:$0xff] %vm376, %v290
  %397 = vst.msk [vmem:[%s3 + $0xa0] sm:$0xff] %vm376, %v293
  %398 = vst.msk [vmem:[%s3 + $0xa8] sm:$0xff] %vm376, %v296
  %399 = vst.msk [vmem:[%s3 + $0xb0] sm:$0xff] %vm376, %v299
  %400 = vst.msk [vmem:[%s3 + $0xb8] sm:$0xff] %vm376, %v302
  %401 = vst.msk [vmem:[%s3 + $0xc0] sm:$0xff] %vm376, %v305
  %402 = vst.msk [vmem:[%s3 + $0xc8] sm:$0xff] %vm376, %v308
  %403 = vst.msk [vmem:[%s3 + $0xd0] sm:$0xff] %vm376, %v311
  %404 = vst.msk [vmem:[%s3 + $0xd8] sm:$0xff] %vm376, %v314
  %405 = vst.msk [vmem:[%s3 + $0xe0] sm:$0xff] %vm376, %v317
  %406 = vst.msk [vmem:[%s3 + $0xe8] sm:$0xff] %vm376, %v320
  %407 = vst.msk [vmem:[%s3 + $0xf0] sm:$0xff] %vm376, %v323
  %408 = vst.msk [vmem:[%s3 + $0xf8] sm:$0xff] %vm376, %v326
  %409 = vst.msk [vmem:[%s3 + $0x100] sm:$0xff] %vm376, %v329
  %410 = vst.msk [vmem:[%s3 + $0x108] sm:$0xff] %vm376, %v332
  %411 = vst.msk [vmem:[%s3 + $0x110] sm:$0xff] %vm376, %v335
  %412 = vst.msk [vmem:[%s3 + $0x118] sm:$0xff] %vm376, %v338
  %413 = vst.msk [vmem:[%s3 + $0x120] sm:$0xff] %vm376, %v341
  %414 = vst.msk [vmem:[%s3 + $0x128] sm:$0xff] %vm376, %v344
  %415 = vst.msk [vmem:[%s3 + $0x130] sm:$0xff] %vm376, %v347
  %416 = vst.msk [vmem:[%s3 + $0x138] sm:$0xff] %vm376, %v350
  %417 = vst.msk [vmem:[%s3 + $0x140] sm:$0xff] %vm376, %v353
  %418 = vst.msk [vmem:[%s3 + $0x148] sm:$0xff] %vm376, %v356
  %419 = vst.msk [vmem:[%s3 + $0x150] sm:$0xff] %vm376, %v359
  %420 = vst.msk [vmem:[%s3 + $0x158] sm:$0xff] %vm376, %v362
  %421 = vst.msk [vmem:[%s3 + $0x160] sm:$0xff] %vm376, %v365
  %422 = vst.msk [vmem:[%s3 + $0x168] sm:$0xff] %vm376, %v368
  %423 = vst.msk [vmem:[%s3 + $0x170] sm:$0xff] %vm376, %v371
  %424 = vst.msk [vmem:[%s3 + $0x178] sm:$0xff] %vm376, %v374
  // Predicated region
  $region14: #{tpu_custom_call.1} parent=0 // pred_check
    _
  $region15: #{tpu_custom_call.1} parent=0 // pred_check_branch
    %426 = sbr.rel (0) target = $region17
  $region16: #{tpu_custom_call.1} parent=0 // pred_region
    _
  $region17: #{tpu_custom_call.1} parent=0 // pred_fallthru
    _
  // Predicated region
  $region18: #{tpu_custom_call.1} parent=0 // pred_check
    _
  $region19: #{tpu_custom_call.1} parent=0 // pred_check_branch
    %428 = sbr.rel (0) target = $region21
  $region20: #{tpu_custom_call.1} parent=0 // pred_region
    _
  $region21: #{tpu_custom_call.1} parent=0 // pred_fallthru
    _

</llo_original>
